<compile_context>
chip_gen: v7x
topology: tpu7x:2x2x1
jax: 0.10.0
libtpu: 0.0.40
codegen_flags: <defaults>
</compile_context>

<pallas_src>
import math
from functools import partial

import jax
import jax.numpy as jnp
from jax import lax
from jax.experimental import pallas as pl
from jax.experimental.pallas import tpu as pltpu


def gpt2_embedding_kernel(ids_ref, seed_ref, tok_hbm_ref, pe_ref, out_ref,
                          gather_sems, *, dropout_p, tokens_per_tile,
                          vocab_size, embed_size, num_s_tiles):
    """One grid step = one (batch row, sequence tile) of `tokens_per_tile` tokens.

    ids_ref     : SMEM (B, S) int32            (scalar-prefetched token ids)
    seed_ref    : SMEM (1,)  int32             (scalar-prefetched dropout seed)
    tok_hbm_ref : HBM  (V, E)                  (embedding table, never copied whole)
    pe_ref      : VMEM (T, E) float32          (PE rows for this tile, auto-pipelined)
    out_ref     : VMEM (1, T, E)               (output block for this tile)
    gather_sems : DMA semaphores, one per in-flight row gather
    """
    b = pl.program_id(0)
    st = pl.program_id(1)
    T = tokens_per_tile
    E = embed_size

    # ---- row gather: one async DMA per token, HBM table -> output VMEM block ----
    def start_one(t, carry):
        tok = ids_ref[b, st * T + t]
        tok = jnp.clip(tok, 0, vocab_size - 1)           # guard out-of-range ids
        pltpu.make_async_copy(
            tok_hbm_ref.at[pl.ds(tok, 1), :],
            out_ref.at[0, pl.ds(t, 1), :],
            gather_sems.at[t],
        ).start()
        return carry

    lax.fori_loop(0, T, start_one, 0)

    def wait_one(t, carry):
        pltpu.make_async_copy(
            tok_hbm_ref.at[pl.ds(0, 1), :],              # shape placeholder for wait
            out_ref.at[0, pl.ds(t, 1), :],
            gather_sems.at[t],
        ).wait()
        return carry

    lax.fori_loop(0, T, wait_one, 0)

    # ---- add positional encoding (dense (T, E) VPU work) ----
    val = out_ref[0].astype(jnp.float32) + pe_ref[...]

    # ---- dropout (training semantics: keep w.p. 1-p, scale kept by 1/(1-p)) ----
    if dropout_p >= 1.0:
        out_ref[0] = jnp.zeros_like(val).astype(out_ref.dtype)
    elif dropout_p > 0.0:
        # Counter-based hash PRNG (splitmix32-style): only 32-bit integer VPU ops,
        # lowers on TPU and in interpret mode alike.
        # TODO(synk): not bit-identical to torch's dropout RNG stream (semantics match).
        tile_id = b * num_s_tiles + st
        base = tile_id * (T * E)
        row = lax.broadcasted_iota(jnp.int32, (T, E), 0)
        col = lax.broadcasted_iota(jnp.int32, (T, E), 1)
        cnt = (base + row * E + col).astype(jnp.uint32)
        x = cnt ^ (seed_ref[0].astype(jnp.uint32) * jnp.uint32(0x9E3779B9))
        x = (x ^ (x >> jnp.uint32(16))) * jnp.uint32(0x7FEB352D)
        x = (x ^ (x >> jnp.uint32(15))) * jnp.uint32(0x846CA68B)
        x = x ^ (x >> jnp.uint32(16))
        threshold = jnp.uint32(min(int(round(dropout_p * 4294967296.0)), 4294967295))
        scale = jnp.float32(1.0 / (1.0 - dropout_p))
        keep_scale = jnp.where(x >= threshold, scale, jnp.float32(0.0))
        out_ref[0] = (val * keep_scale).astype(out_ref.dtype)
    else:
        out_ref[0] = val.astype(out_ref.dtype)


def gpt2_embedding(ids, tok_table, pe_table, seed, *, dropout_p=0.1,
                   training=True, tokens_per_tile=None):
    """ids: (B, S) int32; tok_table: (V, E); pe_table: (max_len, E) f32; seed: (1,) i32."""
    B, S = ids.shape
    V, E = tok_table.shape
    max_len, E2 = pe_table.shape
    assert E == E2, "embed dims must match"
    assert S <= max_len, "sequence longer than positional-encoding table"

    T = tokens_per_tile if tokens_per_tile is not None else min(S, 256)
    assert S % T == 0, "seq length must be divisible by tokens_per_tile"
    assert T % 8 == 0, "tokens_per_tile must be a multiple of 8 (sublane tiling)"
    num_s_tiles = S // T

    rate = float(dropout_p) if training else 0.0
    kernel = partial(gpt2_embedding_kernel, dropout_p=rate, tokens_per_tile=T,
                     vocab_size=V, embed_size=E, num_s_tiles=num_s_tiles)

    # NOTE: output dtype follows the table dtype; pass a bf16 table to halve the
    # HBM writeback if downstream consumes bf16 activations.
    return pl.pallas_call(
        kernel,
        out_shape=jax.ShapeDtypeStruct((B, S, E), tok_table.dtype),
        grid_spec=pltpu.PrefetchScalarGridSpec(
            num_scalar_prefetch=2,                 # ids, seed -> SMEM
            grid=(B, num_s_tiles),
            in_specs=[
                # full embedding table stays in HBM; rows are DMA-gathered on demand
                pl.BlockSpec(memory_space=pl.ANY),
                # PE rows for this sequence tile (auto-pipelined, double-buffered)
                pl.BlockSpec((T, E), lambda b, st, ids, seed: (st, 0)),
            ],
            out_specs=pl.BlockSpec((1, T, E), lambda b, st, ids, seed: (b, st, 0)),
            scratch_shapes=[pltpu.SemaphoreType.DMA((T,))],
        ),
        compiler_params=pltpu.CompilerParams(
            dimension_semantics=("parallel", "parallel")),
    )(ids, seed, tok_table, pe_table)


def make_sinusoidal_pe(max_len, embed_size):
    # standard Transformer sinusoidal positional encoding
    pos = jnp.arange(max_len, dtype=jnp.float32)[:, None]
    div = jnp.exp(jnp.arange(0, embed_size, 2, dtype=jnp.float32)
                  * (-math.log(10000.0) / embed_size))
    pe = jnp.zeros((max_len, embed_size), dtype=jnp.float32)
    pe = pe.at[:, 0::2].set(jnp.sin(pos * div))
    pe = pe.at[:, 1::2].set(jnp.cos(pos * div)[:, : embed_size // 2])
    return pe


if __name__ == "__main__":
    # small, tile-friendly shapes consistent with the module
    vocab_size = 64
    embed_size = 128   # lane-aligned hidden size
    max_len = 16
    batch = 2
    seq = 8
    dropout_p = 0.1

    key = jax.random.PRNGKey(0)
    k_emb, k_ids = jax.random.split(key)

    # nn.Embedding default init: N(0, 1)
    tok_table = jax.random.normal(k_emb, (vocab_size, embed_size), dtype=jnp.float32)
    pe_table = make_sinusoidal_pe(max_len, embed_size)
    ids = jax.random.randint(k_ids, (batch, seq), 0, vocab_size, dtype=jnp.int32)
    seed = jnp.array([0], dtype=jnp.int32)

    # eval path (dropout statically skipped): must match the pure-JAX reference exactly
    out_eval = gpt2_embedding(ids, tok_table, pe_table, seed,
                              dropout_p=dropout_p, training=False)
    out_eval = jax.block_until_ready(out_eval)
    ref = tok_table[ids] + pe_table[None, :seq, :]
    assert out_eval.shape == (batch, seq, embed_size)
    assert out_eval.dtype == jnp.float32
    assert jnp.allclose(out_eval, ref, atol=1e-6), "kernel mismatch vs reference"

    # training path: in-kernel dropout mask + 1/(1-p) scaling
    out_train = gpt2_embedding(ids, tok_table, pe_table, seed,
                               dropout_p=dropout_p, training=True)
    out_train = jax.block_until_ready(out_train)
    assert out_train.shape == (batch, seq, embed_size)
    assert bool(jnp.all(jnp.isfinite(out_train)))

    print("KERNEL_OK")
</pallas_src>

<mosaic_0001>
module attributes {stable_mosaic.version = 11 : i64} {
  func.func @gpt2_embedding_kernel(%arg0: i32, %arg1: i32, %arg2: memref<2x8xi32, #tpu.memory_space<smem>>, %arg3: memref<1xi32, #tpu.memory_space<smem>>, %arg4: memref<64x128xf32, #tpu.memory_space<any>>, %arg5: memref<8x128xf32, #tpu.memory_space<vmem>>, %arg6: memref<1x8x128xf32, #tpu.memory_space<vmem>>, %arg7: memref<8x!tpu.dma_semaphore, #tpu.memory_space<semaphore_mem>>) attributes {dimension_semantics = [#tpu.dimension_semantics<parallel>, #tpu.dimension_semantics<parallel>], iteration_bounds = array<i64: 2, 1>, scalar_prefetch = 2 : i64, scratch_operands = 1 : i64, tpu.core_type = #tpu.core_type<tc>, window_params = [{}, {transform_indices = @transform_1, window_bounds = array<i64: 8, 128>}, {transform_indices = @transform_2, window_bounds = array<i64: 1, 8, 128>}]} {
    %c0_i32 = arith.constant 0 : i32
    %c8_i32 = arith.constant 8 : i32
    %0 = arith.addi %c0_i32, %c8_i32 : i32
    %c1_i32 = arith.constant 1 : i32
    scf.for %arg8 = %c0_i32 to %0 step %c1_i32  : i32 {
      %c8_i32_12 = arith.constant 8 : i32
      %9 = arith.muli %arg1, %c8_i32_12 : i32
      %10 = arith.addi %9, %arg8 : i32
      %11 = arith.index_cast %arg0 : i32 to index
      %12 = arith.index_cast %10 : i32 to index
      %13 = memref.load %arg2[%11, %12] : memref<2x8xi32, #tpu.memory_space<smem>>
      %c0_i32_13 = arith.constant 0 : i32
      %c63_i32 = arith.constant 63 : i32
      %14 = arith.maxsi %c0_i32_13, %13 : i32
      %15 = arith.minsi %c63_i32, %14 : i32
      %c0_i32_14 = arith.constant 0 : i32
      %c0_i32_15 = arith.constant 0 : i32
      %16 = tpu.memref_slice %arg4[%15, %c0_i32_15] : memref<64x128xf32, #tpu.memory_space<any>> -> memref<1x128xf32, #tpu.memory_space<any>>
      %c0_i32_16 = arith.constant 0 : i32
      %17 = tpu.memref_slice %arg6[%c0_i32_14, %arg8, %c0_i32_16] : memref<1x8x128xf32, #tpu.memory_space<vmem>> -> memref<1x1x128xf32, #tpu.memory_space<vmem>>
      %18 = tpu.memref_squeeze %17 : memref<1x1x128xf32, #tpu.memory_space<vmem>> -> memref<1x128xf32, #tpu.memory_space<vmem>>
      %19 = tpu.memref_slice %arg7[%arg8] : memref<8x!tpu.dma_semaphore, #tpu.memory_space<semaphore_mem>> -> memref<1x!tpu.dma_semaphore, #tpu.memory_space<semaphore_mem>>
      %20 = tpu.memref_squeeze %19 : memref<1x!tpu.dma_semaphore, #tpu.memory_space<semaphore_mem>> -> memref<!tpu.dma_semaphore, #tpu.memory_space<semaphore_mem>>
      tpu.enqueue_dma source(%16 : memref<1x128xf32, #tpu.memory_space<any>>) target(%18 : memref<1x128xf32, #tpu.memory_space<vmem>>) target_semaphore(%20 : memref<!tpu.dma_semaphore, #tpu.memory_space<semaphore_mem>>)
    }
    %c8_i32_0 = arith.constant 8 : i32
    %c0_i32_1 = arith.constant 0 : i32
    %c8_i32_2 = arith.constant 8 : i32
    %1 = arith.addi %c0_i32_1, %c8_i32_2 : i32
    %c1_i32_3 = arith.constant 1 : i32
    scf.for %arg8 = %c0_i32_1 to %1 step %c1_i32_3  : i32 {
      %c0_i32_12 = arith.constant 0 : i32
      %c0_i32_13 = arith.constant 0 : i32
      %c0_i32_14 = arith.constant 0 : i32
      %9 = tpu.memref_slice %arg4[%c0_i32_13, %c0_i32_14] : memref<64x128xf32, #tpu.memory_space<any>> -> memref<1x128xf32, #tpu.memory_space<any>>
      %c0_i32_15 = arith.constant 0 : i32
      %10 = tpu.memref_slice %arg6[%c0_i32_12, %arg8, %c0_i32_15] : memref<1x8x128xf32, #tpu.memory_space<vmem>> -> memref<1x1x128xf32, #tpu.memory_space<vmem>>
      %11 = tpu.memref_squeeze %10 : memref<1x1x128xf32, #tpu.memory_space<vmem>> -> memref<1x128xf32, #tpu.memory_space<vmem>>
      %12 = tpu.memref_slice %arg7[%arg8] : memref<8x!tpu.dma_semaphore, #tpu.memory_space<semaphore_mem>> -> memref<1x!tpu.dma_semaphore, #tpu.memory_space<semaphore_mem>>
      %13 = tpu.memref_squeeze %12 : memref<1x!tpu.dma_semaphore, #tpu.memory_space<semaphore_mem>> -> memref<!tpu.dma_semaphore, #tpu.memory_space<semaphore_mem>>
      tpu.wait_dma2 semaphore(%13 : memref<!tpu.dma_semaphore, #tpu.memory_space<semaphore_mem>>) src(%9 : memref<1x128xf32, #tpu.memory_space<any>>) dst(%11 : memref<1x128xf32, #tpu.memory_space<vmem>>)
    }
    %c8_i32_4 = arith.constant 8 : i32
    %c0 = arith.constant 0 : index
    %c0_5 = arith.constant 0 : index
    %c0_6 = arith.constant 0 : index
    %2 = vector.load %arg6[%c0, %c0_5, %c0_6] : memref<1x8x128xf32, #tpu.memory_space<vmem>>, vector<1x8x128xf32>
    %3 = vector.shape_cast %2 : vector<1x8x128xf32> to vector<8x128xf32>
    %c0_7 = arith.constant 0 : index
    %c0_8 = arith.constant 0 : index
    %4 = vector.load %arg5[%c0_7, %c0_8] : memref<8x128xf32, #tpu.memory_space<vmem>>, vector<8x128xf32>
    %5 = arith.addf %3, %4 : vector<8x128xf32>
    %c0_9 = arith.constant 0 : index
    %c0_10 = arith.constant 0 : index
    %c0_11 = arith.constant 0 : index
    %6 = vector.load %arg6[%c0_9, %c0_10, %c0_11] : memref<1x8x128xf32, #tpu.memory_space<vmem>>, vector<1x8x128xf32>
    %7 = vector.shape_cast %6 : vector<1x8x128xf32> to vector<8x128xf32>
    %8 = vector.shape_cast %5 : vector<8x128xf32> to vector<1x8x128xf32>
    tpu.vector_store %arg6[%c0_9, %c0_10, %c0_11], %8 {strides = array<i32>} : memref<1x8x128xf32, #tpu.memory_space<vmem>>, vector<1x8x128xf32>,
    return
  }
  func.func @transform_1(%arg0: i32, %arg1: i32, %arg2: memref<2x8xi32, #tpu.memory_space<smem>>, %arg3: memref<1xi32, #tpu.memory_space<smem>>) -> (i32, i32) {
    %c0_i32 = arith.constant 0 : i32
    %c0_i32_0 = arith.constant 0 : i32
    return %arg1, %c0_i32 : i32, i32
  }
  func.func @transform_2(%arg0: i32, %arg1: i32, %arg2: memref<2x8xi32, #tpu.memory_space<smem>>, %arg3: memref<1xi32, #tpu.memory_space<smem>>) -> (i32, i32, i32) {
    %c0_i32 = arith.constant 0 : i32
    %c0_i32_0 = arith.constant 0 : i32
    return %arg0, %arg1, %c0_i32 : i32, i32, i32
  }
}

</mosaic_0001>

<llo_original>
// kernel: tpu_custom_call.1
$region0: #{tpu_custom_call.1}
  #allocation0 [shape = 'u32[]', space=smem, size = 0x4, offset = 0x4, fixed_abs, tag = 'smem constant byte address 0x4 - core index']
  #allocation1 [shape = 'u32[144,128]{1,0:T(1,128)}', space=vmem, size = 0x12000, scoped, tag = 'internal scratch']
  #allocation2 [shape = 's32[8]{0}', space=sflag, size = 0x20, scoped, tag = 'scratch operand']
  #allocation3 [shape = 's32[1]{0}', space=sflag, size = 0x4, scoped, tag = 'scoped memory for tpu_custom_call.1']
  #allocation4 [shape = 'u8[1024]{0}', space=smem, size = 0x400, scoped, tag = 'prefetched SMEM operand 0']
  #allocation5 [shape = 's32[1]{0:T(128)S(6)}', space=smem, size = 0x200, scoped, tag = 'prefetched SMEM operand 1']
  #allocation10 [shape = 's32[]', space=sflag, size = 0x4, offset = 0, fixed_abs, tag = 'sflag constant byte address 0x0 - dummy sync flag']
  #allocation11 [shape = 's32[]', space=sflag, size = 0x4, offset = 0, fixed_abs, tag = 'sflag constant byte address 0x0 - dummy sync flag']
  #allocation12 [shape = 'u32[]', space=smem, size = 0x4, offset = 0x44, fixed_abs, tag = 'smem constant byte address 0x44 - assertion arg 0']
  #allocation13 [shape = 'u32[]', space=smem, size = 0x4, offset = 0x48, fixed_abs, tag = 'smem constant byte address 0x48 - assertion arg 1']
  %s0 = inlined_call_operand.vmem [shape: s32[2,8], index: 0, kind: input, shape index: {}]
  %s1 = inlined_call_operand.<no memory space> [shape: s32[1], index: 1, kind: input, shape index: {}]
  %s2 = inlined_call_operand.hbm [shape: f32[64,128], index: 2, kind: input, shape index: {}]
  %s3 = inlined_call_operand.hbm [shape: f32[16,128], index: 3, kind: input, shape index: {}]
  %s4 = inlined_call_operand.hbm [shape: f32[2,8,128], index: 4, kind: output, shape index: {}]
  %s5 = sld [smem:[#allocation0]]
  $region59: #{tpu_custom_call.1} parent=0
    _
  %s7 = ssub.s32 1, %s5
  %s8 = scalar_select 0, %s7, %s5
  %s9 = sshll.u32 %s0, 4
  %s10 = int_to_ptr.vmem [resolvable:$true] %s9
  %12 = dma.vmem_to_smem %s10, 32, [#allocation4], [#allocation3]
  %13 = sst [smem:[#allocation5]] %s1
  %14 = dma.done [#allocation3], 32
  %15 = sfence
  $region1: #{tpu_custom_call.1} parent=0
    #allocation6 [shape = 'u8[4096]{0}', space=vmem, size = 0x1000, scoped, tag = 'input window, operand 3, single buffered']
    #allocation7 [shape = 's32[2]{0}', space=sflag, size = 0x8, scoped, tag = 'scoped memory for tpu_custom_call.1']
    #allocation8 [shape = 's32[2]{0}', space=sflag, size = 0x8, scoped, tag = 'scoped memory for tpu_custom_call.1']
    #allocation9 [shape = 'u8[8192]{0}', space=vmem, size = 0x2000, scoped, tag = 'output window, operand 0']
    %16 = vsyncpa [#allocation7], 0
    %17 = vsyncpa [#allocation8], 0
    %s18 = scalar_lea.sflag [#allocation8], 1
    %19 = vsyncpa %s18, 0
    loop: start=0, step=1, limit=4
    $region2: #{tpu_custom_call.1} parent=1 // loop_pre_header
      _
    $region3: #{tpu_custom_call.1} parent=1 // loop_header
      %s21 = sphi 0, %s25
      %p22 = scmp.ge.s32.totalorder %s21, 4
      %s28 = sphi 0, %s40
      %s29 = sphi 0, %s36
      %s30 = sphi 0, %s28
      %s31 = sphi 0, %s29
      %s32 = sphi 0, %s30
      %s33 = sphi 0, %s31
      %s43 = sphi 0, %s45
      %s46 = sphi 0, %s43
      %s47 = sphi 0, %s46
      %s63 = sphi 0, %s47
      %s71 = sphi 0, %s73
      %s74 = sphi 0, %s71
      %s75 = sphi 0, %s74
      %s91 = sphi 0, %s75
    $region4: #{tpu_custom_call.1} parent=1 // loop_header_branch
      %24 = sbr.rel (%p22) target = $region8
    $region5: #{tpu_custom_call.1} parent=1 // loop_body
      %s26 = ssub.s32 %s21, 1
      %s27 = ssub.s32 %s21, 2
      %s34 = sadd.s32 1, %s29
      %p35 = scmp.ge.s32.totalorder %s34, 1
      %s36 = scalar_select %p35, 0, %s34
      %s37 = sadd.s32 1, %s28
      %s38 = scalar_select %p35, %s37, %s28
      %p39 = scmp.ge.s32.totalorder %s38, 2
      %s40 = scalar_select %p39, 0, %s38
      %s41 = ssub.s32 %s29, %s36
      %p42 = scmp.eq.s32.totalorder %s41, 0
      %s44 = sadd.s32 %s43, 1
      %s45 = scalar_select %p42, %s43, %s44
      %p48 = pneg %p42
      %p49 = scmp.eq.s32.totalorder %s21, 1
      %p50 = por %p48, %p49
      %p51 = scmp.ne.s32.totalorder %s43, %s46
      %p52 = scmp.eq.s32.totalorder %s21, 0
      %p53 = por %p51, %p52
      %p54 = scmp.ne.s32.totalorder %s43, %s46
      %p55 = scmp.eq.s32.totalorder %s26, 1
      %p56 = por %p54, %p55
      %p57 = scmp.ne.s32.totalorder %s46, %s47
      %p58 = scmp.eq.s32.totalorder %s26, 0
      %p59 = por %p57, %p58
      %p60 = scmp.ne.s32.totalorder %s46, %s47
      %p61 = scmp.eq.s32.totalorder %s27, 1
      %p62 = por %p60, %p61
      %p64 = scmp.ne.s32.totalorder %s47, %s63
      %p65 = scmp.eq.s32.totalorder %s27, 0
      %p66 = por %p64, %p65
      %s67 = ssub.s32 %s28, %s40
      %s68 = ssub.s32 %s29, %s36
      %s69 = sor.u32 %s67, %s68
      %p70 = scmp.eq.s32.totalorder %s69, 0
      %s72 = sadd.s32 %s71, 1
      %s73 = scalar_select %p70, %s71, %s72
      %p76 = pneg %p70
      %p77 = scmp.eq.s32.totalorder %s21, 1
      %p78 = por %p76, %p77
      %p79 = scmp.ne.s32.totalorder %s71, %s74
      %p80 = scmp.eq.s32.totalorder %s21, 0
      %p81 = por %p79, %p80
      %p82 = scmp.ne.s32.totalorder %s71, %s74
      %p83 = scmp.eq.s32.totalorder %s26, 1
      %p84 = por %p82, %p83
      %p85 = scmp.ne.s32.totalorder %s74, %s75
      %p86 = scmp.eq.s32.totalorder %s26, 0
      %p87 = por %p85, %p86
      %p88 = scmp.ne.s32.totalorder %s74, %s75
      %p89 = scmp.eq.s32.totalorder %s27, 1
      %p90 = por %p88, %p89
      %p92 = scmp.ne.s32.totalorder %s75, %s91
      %p93 = scmp.eq.s32.totalorder %s27, 0
      %p94 = por %p92, %p93
      %p95 = scmp.le.s32.totalorder 1, %s21
      %p96 = scmp.lt.s32.totalorder %s21, 3
      %p97 = pnand %p95, %p96
      %p98 = pneg %p97
      // Predicated region
      $region9: #{tpu_custom_call.1} parent=5 // pred_check
        _
      $region10: #{tpu_custom_call.1} parent=5 // pred_check_branch
        %100 = sbr.rel (%p97) target = $region12
      $region11: #{tpu_custom_call.1} parent=5 // pred_region
        %s101 = ssub.s32 %s21, 1
        // Predicated region
        $region13: #{tpu_custom_call.1} parent=11 // pred_check
          %p102 = pneg %p59
        $region14: #{tpu_custom_call.1} parent=11 // pred_check_branch
          %104 = sbr.rel (%p102) target = $region16
        $region15: #{tpu_custom_call.1} parent=11 // pred_region
          %s106 = ssub.s32 128, 128
          %107 = vsyncadd [#allocation7], %s106
          %s108 = smul.addr %s31, 128
          %s109 = scalar_lea.hbm %s3, %s108
          %s111 = sshll.u32 [#allocation6], 4
          %s112 = int_to_ptr.vmem [resolvable:$true] %s111
          %114 = dma.hbm_to_vmem [thread:$0]  %s109, 128, %s112, [#allocation7]
        $region16: #{tpu_custom_call.1} parent=11 // pred_fallthru
          _
      $region12: #{tpu_custom_call.1} parent=5 // pred_fallthru
        _
      %p115 = scmp.lt.s32.totalorder %s21, 2
      // Predicated region
      $region17: #{tpu_custom_call.1} parent=5 // pred_check
        %p116 = pneg %p115
      $region18: #{tpu_custom_call.1} parent=5 // pred_check_branch
        %118 = sbr.rel (%p116) target = $region20
      $region19: #{tpu_custom_call.1} parent=5 // pred_region
        _
      $region20: #{tpu_custom_call.1} parent=5 // pred_fallthru
        _
      %p119 = scmp.le.s32.totalorder 1, %s21
      %p120 = scmp.lt.s32.totalorder %s21, 3
      %p121 = pnand %p119, %p120
      %p122 = pneg %p121
      // Predicated region
      $region21: #{tpu_custom_call.1} parent=5 // pred_check
        _
      $region22: #{tpu_custom_call.1} parent=5 // pred_check_branch
        %124 = sbr.rel (%p121) target = $region24
      $region23: #{tpu_custom_call.1} parent=5 // pred_region
        %s125 = ssub.s32 %s21, 1
        // Predicated region
        $region25: #{tpu_custom_call.1} parent=23 // pred_check
          %p126 = pneg %p59
        $region26: #{tpu_custom_call.1} parent=23 // pred_check_branch
          %128 = sbr.rel (%p126) target = $region28
        $region27: #{tpu_custom_call.1} parent=23 // pred_region
          %129 = dma.done [#allocation7], 128
        $region28: #{tpu_custom_call.1} parent=23 // pred_fallthru
          _
        %p130 = pneg %p59
        %p131 = pneg %p56
        %p132 = pneg %p87
        %p133 = pneg %p84
        %s134 = sand.u32 %s74, 1
        %s135 = scalar_lea.sflag [#allocation8], %s134
        %s136 = sand.u32 %s74, 1
        %s137 = smul.addr %s136, 8
        %s138 = scalar_lea.vmem [#allocation9], %s137
        loop: start=0, step=1, limit=8
        $region29: #{tpu_custom_call.1} parent=23 // loop_pre_header
          _
        $region30: #{tpu_custom_call.1} parent=23 // loop_header
          %s140 = sphi 0, %s144
          %p141 = scmp.ge.s32.totalorder %s140, 8
        $region31: #{tpu_custom_call.1} parent=23 // loop_header_branch
          %143 = sbr.rel (%p141) target = $region35
        $region32: #{tpu_custom_call.1} parent=23 // loop_body
          %s145 = smul.u32 %s31, 8
          %s146 = sadd.s32 %s145, %s140
          %s147 = sshra.s32 %s146, 7
          %s148 = sand.u32 %s146, 127
          %s149 = sadd.s32 %s147, %s30
          %s150 = smul.u32 %s149, 128
          %s151 = sshra.s32 %s146, 7
          %s152 = sand.u32 %s146, 127
          %s153 = sadd.s32 %s150, %s152
          %s154 = sld [smem:[#allocation4 + %s153]]
          %p155 = scmp.gt.s32.totalorder %s154, 0
          %s156 = scalar_select %p155, %s154, 0
          %p157 = scmp.lt.s32.totalorder %s156, 63
          %s158 = scalar_select %p157, %s156, 63
          %s159 = smul.addr %s158, 16
          %s160 = scalar_lea.hbm %s2, %s159
          %s161 = scalar_lea.vmem %s138, %s140 [#allocation9]
          %s162 = scalar_lea.sflag [#allocation2], %s140
          // Predicated region
          $region36: #{tpu_custom_call.1} parent=32 // pred_check
            _
          $region37: #{tpu_custom_call.1} parent=32 // pred_check_branch
            %164 = sbr.rel target = $region39
          $region38: #{tpu_custom_call.1} parent=32 // pred_region
            %165 = sst [smem:[#allocation12]] [#allocation11]
            %166 = sst [smem:[#allocation13]] [#allocation10]
          $region39: #{tpu_custom_call.1} parent=32 // pred_fallthru
            _
          %168 = shalt.err (0)
          %s170 = sshll.u32 %s161, 4
          %s171 = int_to_ptr.vmem [resolvable:$true] %s170
          %173 = dma.hbm_to_vmem [thread:$0]  %s160, 16, %s171, %s162
        $region33: #{tpu_custom_call.1} parent=23 // loop_footer
          %s144 = sadd.s32 1, %s140
        $region34: #{tpu_custom_call.1} parent=23 // loop_footer_branch
          %139 = sbr.rel target = $region30
        $region35: #{tpu_custom_call.1} parent=23 // loop_exit
          _
        loop: start=0, step=1, limit=8
        $region40: #{tpu_custom_call.1} parent=23 // loop_pre_header
          _
        $region41: #{tpu_custom_call.1} parent=23 // loop_header
          %s175 = sphi 0, %s179
          %p176 = scmp.ge.s32.totalorder %s175, 8
        $region42: #{tpu_custom_call.1} parent=23 // loop_header_branch
          %178 = sbr.rel (%p176) target = $region46
        $region43: #{tpu_custom_call.1} parent=23 // loop_body
          %s180 = scalar_lea.sflag [#allocation2], %s175
          %s181 = smul.u32 1, 1
          %s182 = sshll.u32 %s181, 4
          %183 = dma.done %s180, %s182
        $region44: #{tpu_custom_call.1} parent=23 // loop_footer
          %s179 = sadd.s32 1, %s175
        $region45: #{tpu_custom_call.1} parent=23 // loop_footer_branch
          %174 = sbr.rel target = $region41
        $region46: #{tpu_custom_call.1} parent=23 // loop_exit
          _
        %v184 = vld [vmem:[%s138] sm:$0xff]
        %v185 = vld [vmem:[#allocation6] sm:$0xff]
        %v186 = vadd.f32 %v184, %v185
        %187 = vst [vmem:[%s138] sm:$0xff] %v186
        %s188 = sand.u32 %s74, 1
        %s189 = scalar_lea.sflag [#allocation8], %s188
        %s190 = sand.u32 %s74, 1
        %s191 = smul.addr %s190, 8
        %s192 = scalar_lea.vmem [#allocation9], %s191
        // Predicated region
        $region47: #{tpu_custom_call.1} parent=23 // pred_check
          %p193 = pneg %p84
        $region48: #{tpu_custom_call.1} parent=23 // pred_check_branch
          %195 = sbr.rel (%p193) target = $region50
        $region49: #{tpu_custom_call.1} parent=23 // pred_region
          %s197 = ssub.s32 128, 128
          %198 = vsyncadd %s189, %s197
          %s199 = sadd.s32 %s31, %s30
          %s200 = smul.addr %s199, 128
          %s201 = scalar_lea.hbm %s4, %s200
          %s203 = sshll.u32 %s192, 4
          %s204 = int_to_ptr.vmem [resolvable:$true] %s203
          %206 = dma.vmem_to_hbm [thread:$0]  %s204, 128, %s201, %s189
        $region50: #{tpu_custom_call.1} parent=23 // pred_fallthru
          _
      $region24: #{tpu_custom_call.1} parent=5 // pred_fallthru
        _
      %p207 = scmp.le.s32.totalorder 2, %s21
      // Predicated region
      $region51: #{tpu_custom_call.1} parent=5 // pred_check
        %p208 = pneg %p207
      $region52: #{tpu_custom_call.1} parent=5 // pred_check_branch
        %210 = sbr.rel (%p208) target = $region54
      $region53: #{tpu_custom_call.1} parent=5 // pred_region
        %s211 = ssub.s32 %s21, 2
        // Predicated region
        $region55: #{tpu_custom_call.1} parent=53 // pred_check
          %p212 = pneg %p90
        $region56: #{tpu_custom_call.1} parent=53 // pred_check_branch
          %214 = sbr.rel (%p212) target = $region58
        $region57: #{tpu_custom_call.1} parent=53 // pred_region
          %s215 = sand.u32 %s75, 1
          %s216 = scalar_lea.sflag [#allocation8], %s215
          %s217 = sand.u32 %s75, 1
          %s218 = smul.addr %s217, 8
          %s219 = scalar_lea.vmem [#allocation9], %s218
          %220 = dma.done %s216, 128
        $region58: #{tpu_custom_call.1} parent=53 // pred_fallthru
          _
      $region54: #{tpu_custom_call.1} parent=5 // pred_fallthru
        _
    $region6: #{tpu_custom_call.1} parent=1 // loop_footer
      %s25 = sadd.s32 1, %s21
    $region7: #{tpu_custom_call.1} parent=1 // loop_footer_branch
      %20 = sbr.rel target = $region3
    $region8: #{tpu_custom_call.1} parent=1 // loop_exit
      _
    %221 = vsyncpa [#allocation7], 1
    %s222 = scalar_lea.sflag [#allocation7], 1
    %223 = vsyncpa %s222, 1
    %224 = vsyncpa [#allocation8], 1
    %s225 = scalar_lea.sflag [#allocation8], 1
    %226 = vsyncpa %s225, 1
  %227 = vsyncmov [#allocation2]
  %s228 = vpop.sfrf %227
  %p229 = scmp.eq.s32.totalorder %s228, 0
  %p230 = pneg %p229
  %232 = shalt.err (%p230)
  %s233 = scalar_lea.sflag [#allocation2], 1
  %234 = vsyncmov %s233
  %s235 = vpop.sfrf %234
  %p236 = scmp.eq.s32.totalorder %s235, 0
  %p237 = pneg %p236
  %239 = shalt.err (%p237)
  %s240 = scalar_lea.sflag [#allocation2], 2
  %241 = vsyncmov %s240
  %s242 = vpop.sfrf %241
  %p243 = scmp.eq.s32.totalorder %s242, 0
  %p244 = pneg %p243
  %246 = shalt.err (%p244)
  %s247 = scalar_lea.sflag [#allocation2], 3
  %248 = vsyncmov %s247
  %s249 = vpop.sfrf %248
  %p250 = scmp.eq.s32.totalorder %s249, 0
  %p251 = pneg %p250
  %253 = shalt.err (%p251)
  %s254 = scalar_lea.sflag [#allocation2], 4
  %255 = vsyncmov %s254
  %s256 = vpop.sfrf %255
  %p257 = scmp.eq.s32.totalorder %s256, 0
  %p258 = pneg %p257
  %260 = shalt.err (%p258)
  %s261 = scalar_lea.sflag [#allocation2], 5
  %262 = vsyncmov %s261
  %s263 = vpop.sfrf %262
  %p264 = scmp.eq.s32.totalorder %s263, 0
  %p265 = pneg %p264
  %267 = shalt.err (%p265)
  %s268 = scalar_lea.sflag [#allocation2], 6
  %269 = vsyncmov %s268
  %s270 = vpop.sfrf %269
  %p271 = scmp.eq.s32.totalorder %s270, 0
  %p272 = pneg %p271
  %274 = shalt.err (%p272)
  %s275 = scalar_lea.sflag [#allocation2], 7
  %276 = vsyncmov %s275
  %s277 = vpop.sfrf %276
  %p278 = scmp.eq.s32.totalorder %s277, 0
  %p279 = pneg %p278
  %281 = shalt.err (%p279)

</llo_original>
